<compile_context>
chip_gen: v7x
topology: tpu7x:2x2x1
jax: 0.10.0
libtpu: 0.0.40
codegen_flags: <defaults>
</compile_context>

<pallas_src>
import jax
import jax.numpy as jnp
from jax.experimental import pallas as pl
from jax.experimental.pallas import tpu as pltpu

_BF16 = jnp.bfloat16
_F32 = jnp.float32


# ------------------------------ fused kernel ------------------------------- #
def _place_cols(vals, step, offset, width):
    """Place column r of `vals` (C, n) at column step*r + offset of a zero
    (C, width) array.  Exact 0/1 selection matmul: used for zero-padding and
    for even/odd phase interleaving (avoids strided stores / reshapes)."""
    n = vals.shape[1]
    r = jax.lax.broadcasted_iota(jnp.int32, (n, width), 0)
    q = jax.lax.broadcasted_iota(jnp.int32, (n, width), 1)
    sel = (q == step * r + offset).astype(_F32)
    return jnp.dot(vals, sel, preferred_element_type=_F32)


def _generator_kernel(x_ref, w1_ref, w2o_ref, w2e_ref, w3_ref, w4_ref, o_ref):
    # x_ref : (1, C, L+2)  network input, already edge-padded for layer 1
    # w*_ref: bf16 im2col / polyphase weight matrices (see prepare_weights)
    # o_ref : (1, 2, 8*(L+2))
    Lp = x_ref.shape[2]
    L1 = Lp - 1              # Conv1d  k=2 s=1 p=1
    L2 = 2 * L1 + 1          # ConvT1d k=5 s=2 p=1
    L3 = 2 * L2 + 2          # ConvT1d k=4 s=2 p=0
    L4 = 2 * L3              # ConvT1d k=2 s=2 p=0
    C = x_ref.shape[1]

    x = x_ref[0]                                                       # (C, L+2) f32

    # ---- layer 1: Conv1d(C -> 4C, k=2) as one im2col matmul ----------------
    X1 = jnp.concatenate([x[:, 0:L1], x[:, 1:L1 + 1]], axis=0)         # (2C, L1)
    h1 = jnp.dot(w1_ref[...], X1.astype(_BF16),
                 preferred_element_type=_F32)                          # (4C, L1)
    h1p = _place_cols(h1, 1, 1, L1 + 2)          # zero-pad 1 column each side

    # ---- layer 2: ConvT(4C -> 2C, k=5, s=2, p=1), polyphase -----------------
    # odd output positions t = 2r+1  (flipped even taps [4, 2, 0])
    X2o = jnp.concatenate([h1p[:, 0:L1], h1p[:, 1:L1 + 1], h1p[:, 2:L1 + 2]],
                          axis=0)                                      # (12C, L1)
    o2 = jnp.dot(w2o_ref[...], X2o.astype(_BF16),
                 preferred_element_type=_F32)                          # (2C, L1)
    # even output positions t = 2r  (flipped odd taps [3, 1])
    X2e = jnp.concatenate([h1p[:, 0:L1 + 1], h1p[:, 1:L1 + 2]], axis=0)  # (8C, L1+1)
    e2 = jnp.dot(w2e_ref[...], X2e.astype(_BF16),
                 preferred_element_type=_F32)                          # (2C, L1+1)
    # interleave phases + zero-pad 1 column each side for layer 3
    h2p = _place_cols(e2, 2, 1, L2 + 2) + _place_cols(o2, 2, 2, L2 + 2)  # (2C, L2+2)

    # ---- layer 3: ConvT(2C -> C, k=4, s=2, p=0), polyphase ------------------
    X3 = jnp.concatenate([h2p[:, 0:L2 + 1], h2p[:, 1:L2 + 2]], axis=0)   # (4C, L2+1)
    h3 = jnp.dot(w3_ref[...], X3.astype(_BF16),
                 preferred_element_type=_F32)                          # (2C, L2+1)
    e3, o3 = h3[:C], h3[C:]                      # even-t / odd-t phases
    x3 = _place_cols(e3, 2, 0, L3) + _place_cols(o3, 2, 1, L3)         # (C, L3)

    # ---- layer 4: ConvT(C -> 2, k=2, s=2, p=0), pointwise polyphase ---------
    h4 = jnp.dot(w4_ref[...], x3.astype(_BF16),
                 preferred_element_type=_F32)                          # (4, L3)
    out = _place_cols(h4[:2], 2, 0, L4) + _place_cols(h4[2:], 2, 1, L4)  # (2, L4)

    o_ref[0] = out.astype(o_ref.dtype)


# ------------------------- host-side weight prep --------------------------- #
def prepare_weights(params, dtype=_BF16):
    """One-time repack of PyTorch-layout weights into matmul-ready im2col /
    polyphase matrices (hoisted out of the per-call forward)."""
    w1, w2, w3, w4 = params["w1"], params["w2"], params["w3"], params["w4"]

    def conv_im2col(w_oik):                      # Conv1d (O, I, K) -> (O, K*I)
        O, I, K = w_oik.shape
        return jnp.transpose(w_oik, (0, 2, 1)).reshape(O, K * I)

    def convT_phase(w_iok, taps):                # ConvT (I, O, K), flipped taps
        ws = jnp.stack([w_iok[:, :, k] for k in taps], axis=0)        # (J, I, O)
        J, I, O = ws.shape
        return jnp.transpose(ws, (2, 0, 1)).reshape(O, J * I)         # (O, J*I)

    W1 = conv_im2col(w1)                                              # (4C, 2C)
    W2o = convT_phase(w2, [4, 2, 0])                                  # odd-t  (2C, 12C)
    W2e = convT_phase(w2, [3, 1])                                     # even-t (2C, 8C)
    W3 = jnp.concatenate([convT_phase(w3, [2, 0]),                    # even-t
                          convT_phase(w3, [3, 1])], axis=0)           # odd-t  (2C, 4C)
    W4 = jnp.concatenate([w4[:, :, 0].T, w4[:, :, 1].T], axis=0)      # (4, C)
    return tuple(w.astype(dtype) for w in (W1, W2o, W2e, W3, W4))


# ------------------------------ forward pass ------------------------------- #
def generator_forward(prepped, z, c, out_dtype=jnp.float32):
    """Fused forward of graphcCNNGenerator: a single pallas_call."""
    x = jnp.concatenate([z, c], axis=1)
    x = jnp.pad(x, ((0, 0), (0, 0), (1, 1)))      # layer-1 padding, once, on host
    N, C, Lp = x.shape
    L4 = 8 * Lp                                   # final length = 8*L + 16
    weight_specs = [pl.BlockSpec(w.shape, lambda n: (0, 0)) for w in prepped]
    return pl.pallas_call(
        _generator_kernel,
        out_shape=jax.ShapeDtypeStruct((N, 2, L4), out_dtype),
        grid=(N,),
        in_specs=[pl.BlockSpec((1, C, Lp), lambda n: (n, 0, 0))] + weight_specs,
        out_specs=pl.BlockSpec((1, 2, L4), lambda n: (n, 0, 0)),
        compiler_params=pltpu.CompilerParams(dimension_semantics=("parallel",)),
    )(x, *prepped)


# ------------------------------- module init ------------------------------- #
def init_params(key, nz, nc):
    C = nz + nc
    k1, k2, k3, k4 = jax.random.split(key, 4)
    return {
        # PyTorch layouts: Conv1d -> (out,in,K); ConvTranspose1d -> (in,out,K)
        "w1": 0.1 * jax.random.normal(k1, (4 * C, C, 2), jnp.float32),
        "w2": 0.1 * jax.random.normal(k2, (4 * C, 2 * C, 5), jnp.float32),
        "w3": 0.1 * jax.random.normal(k3, (2 * C, C, 4), jnp.float32),
        "w4": 0.1 * jax.random.normal(k4, (C, 2, 2), jnp.float32),
    }


# --------------------------- pure-lax reference ---------------------------- #
def _ref_forward(params, z, c, compute_dtype=_BF16):
    """Reference with the same bf16-operand / f32-accumulate recipe."""
    dn = ("NCH", "OIH", "NCH")

    def conv(x, w_oik, pad):
        return jax.lax.conv_general_dilated(
            x.astype(compute_dtype), w_oik.astype(compute_dtype), (1,),
            [(pad, pad)], dimension_numbers=dn,
            preferred_element_type=jnp.float32)

    def convT(x, w_iok, stride, pad):
        K = w_iok.shape[2]
        w = jnp.flip(jnp.transpose(w_iok, (1, 0, 2)), axis=2)
        return jax.lax.conv_general_dilated(
            x.astype(compute_dtype), w.astype(compute_dtype), (1,),
            [(K - 1 - pad, K - 1 - pad)], lhs_dilation=(stride,),
            dimension_numbers=dn, preferred_element_type=jnp.float32)

    x = jnp.concatenate([z, c], axis=1)
    x = conv(x, params["w1"], 1)
    x = convT(x, params["w2"], 2, 1)
    x = convT(x, params["w3"], 2, 0)
    return convT(x, params["w4"], 2, 0)


if __name__ == "__main__":
    nz, nc, N, L = 4, 4, 2, 8
    key = jax.random.PRNGKey(0)
    kp, kz, kc = jax.random.split(key, 3)
    params = init_params(kp, nz, nc)
    z = jax.random.normal(kz, (N, nz, L), jnp.float32)
    c = jax.random.normal(kc, (N, nc, L), jnp.float32)

    prepped = prepare_weights(params)            # one-time, outside the forward

    out = jax.jit(generator_forward)(prepped, z, c)
    out = jax.block_until_ready(out)

    assert out.shape == (N, 2, 8 * L + 16), out.shape
    ref = _ref_forward(params, z, c)
    assert jnp.allclose(out, ref, atol=5e-3, rtol=5e-2), (
        "mismatch vs lax reference, max abs diff = "
        + str(float(jnp.max(jnp.abs(out - ref)))))
    print("KERNEL_OK")
</pallas_src>

<mosaic_0001>
module attributes {stable_mosaic.version = 11 : i64} {
  func.func @_generator_kernel(%arg0: i32, %arg1: memref<1x8x10xf32, #tpu.memory_space<vmem>>, %arg2: memref<32x16xbf16, #tpu.memory_space<vmem>>, %arg3: memref<16x96xbf16, #tpu.memory_space<vmem>>, %arg4: memref<16x64xbf16, #tpu.memory_space<vmem>>, %arg5: memref<16x32xbf16, #tpu.memory_space<vmem>>, %arg6: memref<4x8xbf16, #tpu.memory_space<vmem>>, %arg7: memref<1x2x80xf32, #tpu.memory_space<vmem>>) attributes {dimension_semantics = [#tpu.dimension_semantics<parallel>], iteration_bounds = array<i64: 2>, scalar_prefetch = 0 : i64, scratch_operands = 0 : i64, tpu.core_type = #tpu.core_type<tc>, window_params = [{transform_indices = @transform_0, window_bounds = array<i64: 1, 8, 10>}, {pipeline_mode = #tpu.pipeline_mode<synchronous>, transform_indices = @transform_1, window_bounds = array<i64: 32, 16>}, {pipeline_mode = #tpu.pipeline_mode<synchronous>, transform_indices = @transform_2, window_bounds = array<i64: 16, 96>}, {pipeline_mode = #tpu.pipeline_mode<synchronous>, transform_indices = @transform_3, window_bounds = array<i64: 16, 64>}, {pipeline_mode = #tpu.pipeline_mode<synchronous>, transform_indices = @transform_4, window_bounds = array<i64: 16, 32>}, {pipeline_mode = #tpu.pipeline_mode<synchronous>, transform_indices = @transform_5, window_bounds = array<i64: 4, 8>}, {transform_indices = @transform_6, window_bounds = array<i64: 1, 2, 80>}]} {
    %c0 = arith.constant 0 : index
    %c0_0 = arith.constant 0 : index
    %c0_1 = arith.constant 0 : index
    %0 = vector.load %arg1[%c0, %c0_0, %c0_1] : memref<1x8x10xf32, #tpu.memory_space<vmem>>, vector<1x8x10xf32>
    %1 = vector.shape_cast %0 : vector<1x8x10xf32> to vector<8x10xf32>
    %2 = vector.extract_strided_slice %1 {offsets = [0, 0], sizes = [8, 9], strides = [1, 1]} : vector<8x10xf32> to vector<8x9xf32>
    %3 = vector.extract_strided_slice %1 {offsets = [0, 1], sizes = [8, 9], strides = [1, 1]} : vector<8x10xf32> to vector<8x9xf32>
    %4 = tpu.concatenate %2, %3 in 0 : vector<8x9xf32>, vector<8x9xf32> -> vector<16x9xf32>
    %c0_2 = arith.constant 0 : index
    %c0_3 = arith.constant 0 : index
    %5 = vector.load %arg2[%c0_2, %c0_3] : memref<32x16xbf16, #tpu.memory_space<vmem>>, vector<32x16xbf16>
    %6 = arith.truncf %4 : vector<16x9xf32> to vector<16x9xbf16>
    %cst = arith.constant dense<0.000000e+00> : vector<32x9xf32>
    %7 = tpu.matmul %5, %6, %cst {dimension_numbers = #tpu.dot_dimension_numbers<[1], [0], [0], [1], [0, 0, 1, 1], [], []>} : vector<32x16xbf16>, vector<16x9xbf16>, vector<32x9xf32> -> vector<32x9xf32>
    %8 = tpu.iota {dimensions = array<i32: 0>} : vector<9x11xi32>
    %9 = tpu.iota {dimensions = array<i32: 1>} : vector<9x11xi32>
    %c1_i32 = arith.constant 1 : i32
    %10 = vector.broadcast %c1_i32 : i32 to vector<9x11xi32>
    %11 = arith.muli %10, %8 : vector<9x11xi32>
    %c1_i32_4 = arith.constant 1 : i32
    %12 = vector.broadcast %c1_i32_4 : i32 to vector<9x11xi32>
    %13 = arith.addi %11, %12 : vector<9x11xi32>
    %14 = arith.cmpi eq, %9, %13 : vector<9x11xi32>
    %15 = arith.extui %14 : vector<9x11xi1> to vector<9x11xi32>
    %16 = arith.sitofp %15 : vector<9x11xi32> to vector<9x11xf32>
    %cst_5 = arith.constant dense<0.000000e+00> : vector<32x11xf32>
    %17 = tpu.matmul %7, %16, %cst_5 {dimension_numbers = #tpu.dot_dimension_numbers<[1], [0], [0], [1], [0, 0, 1, 1], [], []>} : vector<32x9xf32>, vector<9x11xf32>, vector<32x11xf32> -> vector<32x11xf32>
    %18 = vector.extract_strided_slice %17 {offsets = [0, 0], sizes = [32, 9], strides = [1, 1]} : vector<32x11xf32> to vector<32x9xf32>
    %19 = vector.extract_strided_slice %17 {offsets = [0, 1], sizes = [32, 9], strides = [1, 1]} : vector<32x11xf32> to vector<32x9xf32>
    %20 = vector.extract_strided_slice %17 {offsets = [0, 2], sizes = [32, 9], strides = [1, 1]} : vector<32x11xf32> to vector<32x9xf32>
    %21 = tpu.concatenate %18, %19, %20 in 0 : vector<32x9xf32>, vector<32x9xf32>, vector<32x9xf32> -> vector<96x9xf32>
    %c0_6 = arith.constant 0 : index
    %c0_7 = arith.constant 0 : index
    %22 = vector.load %arg3[%c0_6, %c0_7] : memref<16x96xbf16, #tpu.memory_space<vmem>>, vector<16x96xbf16>
    %23 = arith.truncf %21 : vector<96x9xf32> to vector<96x9xbf16>
    %cst_8 = arith.constant dense<0.000000e+00> : vector<16x9xf32>
    %24 = tpu.matmul %22, %23, %cst_8 {dimension_numbers = #tpu.dot_dimension_numbers<[1], [0], [0], [1], [0, 0, 1, 1], [], []>} : vector<16x96xbf16>, vector<96x9xbf16>, vector<16x9xf32> -> vector<16x9xf32>
    %25 = vector.extract_strided_slice %17 {offsets = [0, 0], sizes = [32, 10], strides = [1, 1]} : vector<32x11xf32> to vector<32x10xf32>
    %26 = vector.extract_strided_slice %17 {offsets = [0, 1], sizes = [32, 10], strides = [1, 1]} : vector<32x11xf32> to vector<32x10xf32>
    %27 = tpu.concatenate %25, %26 in 0 : vector<32x10xf32>, vector<32x10xf32> -> vector<64x10xf32>
    %c0_9 = arith.constant 0 : index
    %c0_10 = arith.constant 0 : index
    %28 = vector.load %arg4[%c0_9, %c0_10] : memref<16x64xbf16, #tpu.memory_space<vmem>>, vector<16x64xbf16>
    %29 = arith.truncf %27 : vector<64x10xf32> to vector<64x10xbf16>
    %cst_11 = arith.constant dense<0.000000e+00> : vector<16x10xf32>
    %30 = tpu.matmul %28, %29, %cst_11 {dimension_numbers = #tpu.dot_dimension_numbers<[1], [0], [0], [1], [0, 0, 1, 1], [], []>} : vector<16x64xbf16>, vector<64x10xbf16>, vector<16x10xf32> -> vector<16x10xf32>
    %31 = tpu.iota {dimensions = array<i32: 0>} : vector<10x21xi32>
    %32 = tpu.iota {dimensions = array<i32: 1>} : vector<10x21xi32>
    %c2_i32 = arith.constant 2 : i32
    %33 = vector.broadcast %c2_i32 : i32 to vector<10x21xi32>
    %34 = arith.muli %33, %31 : vector<10x21xi32>
    %c1_i32_12 = arith.constant 1 : i32
    %35 = vector.broadcast %c1_i32_12 : i32 to vector<10x21xi32>
    %36 = arith.addi %34, %35 : vector<10x21xi32>
    %37 = arith.cmpi eq, %32, %36 : vector<10x21xi32>
    %38 = arith.extui %37 : vector<10x21xi1> to vector<10x21xi32>
    %39 = arith.sitofp %38 : vector<10x21xi32> to vector<10x21xf32>
    %cst_13 = arith.constant dense<0.000000e+00> : vector<16x21xf32>
    %40 = tpu.matmul %30, %39, %cst_13 {dimension_numbers = #tpu.dot_dimension_numbers<[1], [0], [0], [1], [0, 0, 1, 1], [], []>} : vector<16x10xf32>, vector<10x21xf32>, vector<16x21xf32> -> vector<16x21xf32>
    %41 = tpu.iota {dimensions = array<i32: 0>} : vector<9x21xi32>
    %42 = tpu.iota {dimensions = array<i32: 1>} : vector<9x21xi32>
    %c2_i32_14 = arith.constant 2 : i32
    %43 = vector.broadcast %c2_i32_14 : i32 to vector<9x21xi32>
    %44 = arith.muli %43, %41 : vector<9x21xi32>
    %c2_i32_15 = arith.constant 2 : i32
    %45 = vector.broadcast %c2_i32_15 : i32 to vector<9x21xi32>
    %46 = arith.addi %44, %45 : vector<9x21xi32>
    %47 = arith.cmpi eq, %42, %46 : vector<9x21xi32>
    %48 = arith.extui %47 : vector<9x21xi1> to vector<9x21xi32>
    %49 = arith.sitofp %48 : vector<9x21xi32> to vector<9x21xf32>
    %cst_16 = arith.constant dense<0.000000e+00> : vector<16x21xf32>
    %50 = tpu.matmul %24, %49, %cst_16 {dimension_numbers = #tpu.dot_dimension_numbers<[1], [0], [0], [1], [0, 0, 1, 1], [], []>} : vector<16x9xf32>, vector<9x21xf32>, vector<16x21xf32> -> vector<16x21xf32>
    %51 = arith.addf %40, %50 : vector<16x21xf32>
    %52 = vector.extract_strided_slice %51 {offsets = [0, 0], sizes = [16, 20], strides = [1, 1]} : vector<16x21xf32> to vector<16x20xf32>
    %53 = vector.extract_strided_slice %51 {offsets = [0, 1], sizes = [16, 20], strides = [1, 1]} : vector<16x21xf32> to vector<16x20xf32>
    %54 = tpu.concatenate %52, %53 in 0 : vector<16x20xf32>, vector<16x20xf32> -> vector<32x20xf32>
    %c0_17 = arith.constant 0 : index
    %c0_18 = arith.constant 0 : index
    %55 = vector.load %arg5[%c0_17, %c0_18] : memref<16x32xbf16, #tpu.memory_space<vmem>>, vector<16x32xbf16>
    %56 = arith.truncf %54 : vector<32x20xf32> to vector<32x20xbf16>
    %cst_19 = arith.constant dense<0.000000e+00> : vector<16x20xf32>
    %57 = tpu.matmul %55, %56, %cst_19 {dimension_numbers = #tpu.dot_dimension_numbers<[1], [0], [0], [1], [0, 0, 1, 1], [], []>} : vector<16x32xbf16>, vector<32x20xbf16>, vector<16x20xf32> -> vector<16x20xf32>
    %58 = vector.extract_strided_slice %57 {offsets = [0, 0], sizes = [8, 20], strides = [1, 1]} : vector<16x20xf32> to vector<8x20xf32>
    %59 = vector.extract_strided_slice %57 {offsets = [8, 0], sizes = [8, 20], strides = [1, 1]} : vector<16x20xf32> to vector<8x20xf32>
    %60 = tpu.iota {dimensions = array<i32: 0>} : vector<20x40xi32>
    %61 = tpu.iota {dimensions = array<i32: 1>} : vector<20x40xi32>
    %c2_i32_20 = arith.constant 2 : i32
    %62 = vector.broadcast %c2_i32_20 : i32 to vector<20x40xi32>
    %63 = arith.muli %62, %60 : vector<20x40xi32>
    %c0_i32 = arith.constant 0 : i32
    %64 = vector.broadcast %c0_i32 : i32 to vector<20x40xi32>
    %65 = arith.addi %63, %64 : vector<20x40xi32>
    %66 = arith.cmpi eq, %61, %65 : vector<20x40xi32>
    %67 = arith.extui %66 : vector<20x40xi1> to vector<20x40xi32>
    %68 = arith.sitofp %67 : vector<20x40xi32> to vector<20x40xf32>
    %cst_21 = arith.constant dense<0.000000e+00> : vector<8x40xf32>
    %69 = tpu.matmul %58, %68, %cst_21 {dimension_numbers = #tpu.dot_dimension_numbers<[1], [0], [0], [1], [0, 0, 1, 1], [], []>} : vector<8x20xf32>, vector<20x40xf32>, vector<8x40xf32> -> vector<8x40xf32>
    %70 = tpu.iota {dimensions = array<i32: 0>} : vector<20x40xi32>
    %71 = tpu.iota {dimensions = array<i32: 1>} : vector<20x40xi32>
    %c2_i32_22 = arith.constant 2 : i32
    %72 = vector.broadcast %c2_i32_22 : i32 to vector<20x40xi32>
    %73 = arith.muli %72, %70 : vector<20x40xi32>
    %c1_i32_23 = arith.constant 1 : i32
    %74 = vector.broadcast %c1_i32_23 : i32 to vector<20x40xi32>
    %75 = arith.addi %73, %74 : vector<20x40xi32>
    %76 = arith.cmpi eq, %71, %75 : vector<20x40xi32>
    %77 = arith.extui %76 : vector<20x40xi1> to vector<20x40xi32>
    %78 = arith.sitofp %77 : vector<20x40xi32> to vector<20x40xf32>
    %cst_24 = arith.constant dense<0.000000e+00> : vector<8x40xf32>
    %79 = tpu.matmul %59, %78, %cst_24 {dimension_numbers = #tpu.dot_dimension_numbers<[1], [0], [0], [1], [0, 0, 1, 1], [], []>} : vector<8x20xf32>, vector<20x40xf32>, vector<8x40xf32> -> vector<8x40xf32>
    %80 = arith.addf %69, %79 : vector<8x40xf32>
    %c0_25 = arith.constant 0 : index
    %c0_26 = arith.constant 0 : index
    %81 = vector.load %arg6[%c0_25, %c0_26] : memref<4x8xbf16, #tpu.memory_space<vmem>>, vector<4x8xbf16>
    %82 = arith.truncf %80 : vector<8x40xf32> to vector<8x40xbf16>
    %cst_27 = arith.constant dense<0.000000e+00> : vector<4x40xf32>
    %83 = tpu.matmul %81, %82, %cst_27 {dimension_numbers = #tpu.dot_dimension_numbers<[1], [0], [0], [1], [0, 0, 1, 1], [], []>} : vector<4x8xbf16>, vector<8x40xbf16>, vector<4x40xf32> -> vector<4x40xf32>
    %84 = vector.extract_strided_slice %83 {offsets = [0, 0], sizes = [2, 40], strides = [1, 1]} : vector<4x40xf32> to vector<2x40xf32>
    %85 = tpu.iota {dimensions = array<i32: 0>} : vector<40x80xi32>
    %86 = tpu.iota {dimensions = array<i32: 1>} : vector<40x80xi32>
    %c2_i32_28 = arith.constant 2 : i32
    %87 = vector.broadcast %c2_i32_28 : i32 to vector<40x80xi32>
    %88 = arith.muli %87, %85 : vector<40x80xi32>
    %c0_i32_29 = arith.constant 0 : i32
    %89 = vector.broadcast %c0_i32_29 : i32 to vector<40x80xi32>
    %90 = arith.addi %88, %89 : vector<40x80xi32>
    %91 = arith.cmpi eq, %86, %90 : vector<40x80xi32>
    %92 = arith.extui %91 : vector<40x80xi1> to vector<40x80xi32>
    %93 = arith.sitofp %92 : vector<40x80xi32> to vector<40x80xf32>
    %cst_30 = arith.constant dense<0.000000e+00> : vector<2x80xf32>
    %94 = tpu.matmul %84, %93, %cst_30 {dimension_numbers = #tpu.dot_dimension_numbers<[1], [0], [0], [1], [0, 0, 1, 1], [], []>} : vector<2x40xf32>, vector<40x80xf32>, vector<2x80xf32> -> vector<2x80xf32>
    %95 = vector.extract_strided_slice %83 {offsets = [2, 0], sizes = [2, 40], strides = [1, 1]} : vector<4x40xf32> to vector<2x40xf32>
    %96 = tpu.iota {dimensions = array<i32: 0>} : vector<40x80xi32>
    %97 = tpu.iota {dimensions = array<i32: 1>} : vector<40x80xi32>
    %c2_i32_31 = arith.constant 2 : i32
    %98 = vector.broadcast %c2_i32_31 : i32 to vector<40x80xi32>
    %99 = arith.muli %98, %96 : vector<40x80xi32>
    %c1_i32_32 = arith.constant 1 : i32
    %100 = vector.broadcast %c1_i32_32 : i32 to vector<40x80xi32>
    %101 = arith.addi %99, %100 : vector<40x80xi32>
    %102 = arith.cmpi eq, %97, %101 : vector<40x80xi32>
    %103 = arith.extui %102 : vector<40x80xi1> to vector<40x80xi32>
    %104 = arith.sitofp %103 : vector<40x80xi32> to vector<40x80xf32>
    %cst_33 = arith.constant dense<0.000000e+00> : vector<2x80xf32>
    %105 = tpu.matmul %95, %104, %cst_33 {dimension_numbers = #tpu.dot_dimension_numbers<[1], [0], [0], [1], [0, 0, 1, 1], [], []>} : vector<2x40xf32>, vector<40x80xf32>, vector<2x80xf32> -> vector<2x80xf32>
    %106 = arith.addf %94, %105 : vector<2x80xf32>
    %c0_34 = arith.constant 0 : index
    %c0_35 = arith.constant 0 : index
    %c0_36 = arith.constant 0 : index
    %107 = vector.load %arg7[%c0_34, %c0_35, %c0_36] : memref<1x2x80xf32, #tpu.memory_space<vmem>>, vector<1x2x80xf32>
    %108 = vector.shape_cast %107 : vector<1x2x80xf32> to vector<2x80xf32>
    %109 = vector.shape_cast %106 : vector<2x80xf32> to vector<1x2x80xf32>
    tpu.vector_store %arg7[%c0_34, %c0_35, %c0_36], %109 {strides = array<i32>} : memref<1x2x80xf32, #tpu.memory_space<vmem>>, vector<1x2x80xf32>,
    return
  }
  func.func @transform_0(%arg0: i32) -> (i32, i32, i32) {
    %c0_i32 = arith.constant 0 : i32
    %c0_i32_0 = arith.constant 0 : i32
    %c0_i32_1 = arith.constant 0 : i32
    return %arg0, %c0_i32, %c0_i32_0 : i32, i32, i32
  }
  func.func @transform_1(%arg0: i32) -> (i32, i32) {
    %c0_i32 = arith.constant 0 : i32
    %c0_i32_0 = arith.constant 0 : i32
    %c0_i32_1 = arith.constant 0 : i32
    return %c0_i32, %c0_i32_0 : i32, i32
  }
  func.func @transform_2(%arg0: i32) -> (i32, i32) {
    %c0_i32 = arith.constant 0 : i32
    %c0_i32_0 = arith.constant 0 : i32
    %c0_i32_1 = arith.constant 0 : i32
    return %c0_i32, %c0_i32_0 : i32, i32
  }
  func.func @transform_3(%arg0: i32) -> (i32, i32) {
    %c0_i32 = arith.constant 0 : i32
    %c0_i32_0 = arith.constant 0 : i32
    %c0_i32_1 = arith.constant 0 : i32
    return %c0_i32, %c0_i32_0 : i32, i32
  }
  func.func @transform_4(%arg0: i32) -> (i32, i32) {
    %c0_i32 = arith.constant 0 : i32
    %c0_i32_0 = arith.constant 0 : i32
    %c0_i32_1 = arith.constant 0 : i32
    return %c0_i32, %c0_i32_0 : i32, i32
  }
  func.func @transform_5(%arg0: i32) -> (i32, i32) {
    %c0_i32 = arith.constant 0 : i32
    %c0_i32_0 = arith.constant 0 : i32
    %c0_i32_1 = arith.constant 0 : i32
    return %c0_i32, %c0_i32_0 : i32, i32
  }
  func.func @transform_6(%arg0: i32) -> (i32, i32, i32) {
    %c0_i32 = arith.constant 0 : i32
    %c0_i32_0 = arith.constant 0 : i32
    %c0_i32_1 = arith.constant 0 : i32
    return %arg0, %c0_i32, %c0_i32_0 : i32, i32, i32
  }
}

</mosaic_0001>

<llo_original>
// kernel: generator_forward.1
$region0: #{generator_forward.1}
  #allocation0 [shape = 'u32[]', space=smem, size = 0x4, offset = 0x4, fixed_abs, tag = 'smem constant byte address 0x4 - core index']
  #allocation1 [shape = 'u32[144,128]{1,0:T(1,128)}', space=vmem, size = 0x12000, scoped, tag = 'internal scratch']
  %s0 = inlined_call_operand.vmem [shape: f32[2,8,10], index: 0, kind: input, shape index: {}]
  %s1 = inlined_call_operand.vmem [shape: bf16[32,16], index: 1, kind: input, shape index: {}]
  %s2 = inlined_call_operand.vmem [shape: bf16[16,96], index: 2, kind: input, shape index: {}]
  %s3 = inlined_call_operand.vmem [shape: bf16[16,64], index: 3, kind: input, shape index: {}]
  %s4 = inlined_call_operand.vmem [shape: bf16[16,32], index: 4, kind: input, shape index: {}]
  %s5 = inlined_call_operand.vmem [shape: bf16[4,8], index: 5, kind: input, shape index: {}]
  %s6 = inlined_call_operand.hbm [shape: f32[2,2,80], index: 6, kind: output, shape index: {}]
  %s7 = sld [smem:[#allocation0]]
  $region57: #{generator_forward.1} parent=0
    _
  %s9 = ssub.s32 1, %s7
  %s10 = scalar_select 0, %s9, %s7
  $region1: #{generator_forward.1} parent=0
    #allocation2 [shape = 'u8[2048]{0}', space=vmem, size = 0x800, scoped, tag = 'output window, operand 0']
    #allocation3 [shape = 's32[2]{0}', space=sflag, size = 0x8, scoped, tag = 'scoped memory for generator_forward.1']
    %11 = vsyncpa [#allocation3], 0
    %s12 = scalar_lea.sflag [#allocation3], 1
    %13 = vsyncpa %s12, 0
    loop: start=0, step=1, limit=4
    $region2: #{generator_forward.1} parent=1 // loop_pre_header
      _
    $region3: #{generator_forward.1} parent=1 // loop_header
      %s15 = sphi 0, %s19
      %p16 = scmp.ge.s32.totalorder %s15, 4
      %s25 = sphi 0, %s27
      %s28 = sphi 0, %s25
      %s29 = sphi 0, %s28
      %s45 = sphi 0, %s29
      %s49 = sphi 0, %s49
      %s51 = sphi 0, %s49
      %s52 = sphi 0, %s51
      %s66 = sphi 0, %s52
      %s70 = sphi 0, %s70
      %s72 = sphi 0, %s70
      %s73 = sphi 0, %s72
      %s87 = sphi 0, %s73
      %s91 = sphi 0, %s91
      %s93 = sphi 0, %s91
      %s94 = sphi 0, %s93
      %s108 = sphi 0, %s94
      %s112 = sphi 0, %s112
      %s114 = sphi 0, %s112
      %s115 = sphi 0, %s114
      %s129 = sphi 0, %s115
      %s133 = sphi 0, %s133
      %s135 = sphi 0, %s133
      %s136 = sphi 0, %s135
      %s150 = sphi 0, %s136
      %s156 = sphi 0, %s158
      %s159 = sphi 0, %s156
      %s160 = sphi 0, %s159
      %s176 = sphi 0, %s160
    $region4: #{generator_forward.1} parent=1 // loop_header_branch
      %18 = sbr.rel (%p16) target = $region8
    $region5: #{generator_forward.1} parent=1 // loop_body
      %s20 = ssub.s32 %s15, 1
      %s21 = ssub.s32 %s15, 2
      %s22 = sadd.s32 %s15, 1
      %s23 = ssub.s32 %s15, %s22
      %p24 = scmp.eq.s32.totalorder %s23, 0
      %s26 = sadd.s32 %s25, 1
      %s27 = scalar_select %p24, %s25, %s26
      %p30 = pneg %p24
      %p31 = scmp.eq.s32.totalorder %s15, 1
      %p32 = por %p30, %p31
      %p33 = scmp.ne.s32.totalorder %s25, %s28
      %p34 = scmp.eq.s32.totalorder %s15, 0
      %p35 = por %p33, %p34
      %p36 = scmp.ne.s32.totalorder %s25, %s28
      %p37 = scmp.eq.s32.totalorder %s20, 1
      %p38 = por %p36, %p37
      %p39 = scmp.ne.s32.totalorder %s28, %s29
      %p40 = scmp.eq.s32.totalorder %s20, 0
      %p41 = por %p39, %p40
      %p42 = scmp.ne.s32.totalorder %s28, %s29
      %p43 = scmp.eq.s32.totalorder %s21, 1
      %p44 = por %p42, %p43
      %p46 = scmp.ne.s32.totalorder %s29, %s45
      %p47 = scmp.eq.s32.totalorder %s21, 0
      %p48 = por %p46, %p47
      %s50 = sadd.s32 %s49, 1
      %p53 = scmp.eq.s32.totalorder %s15, 1
      %p54 = scmp.ne.s32.totalorder %s49, %s51
      %p55 = scmp.eq.s32.totalorder %s15, 0
      %p56 = por %p54, %p55
      %p57 = scmp.ne.s32.totalorder %s49, %s51
      %p58 = scmp.eq.s32.totalorder %s20, 1
      %p59 = por %p57, %p58
      %p60 = scmp.ne.s32.totalorder %s51, %s52
      %p61 = scmp.eq.s32.totalorder %s20, 0
      %p62 = por %p60, %p61
      %p63 = scmp.ne.s32.totalorder %s51, %s52
      %p64 = scmp.eq.s32.totalorder %s21, 1
      %p65 = por %p63, %p64
      %p67 = scmp.ne.s32.totalorder %s52, %s66
      %p68 = scmp.eq.s32.totalorder %s21, 0
      %p69 = por %p67, %p68
      %s71 = sadd.s32 %s70, 1
      %p74 = scmp.eq.s32.totalorder %s15, 1
      %p75 = scmp.ne.s32.totalorder %s70, %s72
      %p76 = scmp.eq.s32.totalorder %s15, 0
      %p77 = por %p75, %p76
      %p78 = scmp.ne.s32.totalorder %s70, %s72
      %p79 = scmp.eq.s32.totalorder %s20, 1
      %p80 = por %p78, %p79
      %p81 = scmp.ne.s32.totalorder %s72, %s73
      %p82 = scmp.eq.s32.totalorder %s20, 0
      %p83 = por %p81, %p82
      %p84 = scmp.ne.s32.totalorder %s72, %s73
      %p85 = scmp.eq.s32.totalorder %s21, 1
      %p86 = por %p84, %p85
      %p88 = scmp.ne.s32.totalorder %s73, %s87
      %p89 = scmp.eq.s32.totalorder %s21, 0
      %p90 = por %p88, %p89
      %s92 = sadd.s32 %s91, 1
      %p95 = scmp.eq.s32.totalorder %s15, 1
      %p96 = scmp.ne.s32.totalorder %s91, %s93
      %p97 = scmp.eq.s32.totalorder %s15, 0
      %p98 = por %p96, %p97
      %p99 = scmp.ne.s32.totalorder %s91, %s93
      %p100 = scmp.eq.s32.totalorder %s20, 1
      %p101 = por %p99, %p100
      %p102 = scmp.ne.s32.totalorder %s93, %s94
      %p103 = scmp.eq.s32.totalorder %s20, 0
      %p104 = por %p102, %p103
      %p105 = scmp.ne.s32.totalorder %s93, %s94
      %p106 = scmp.eq.s32.totalorder %s21, 1
      %p107 = por %p105, %p106
      %p109 = scmp.ne.s32.totalorder %s94, %s108
      %p110 = scmp.eq.s32.totalorder %s21, 0
      %p111 = por %p109, %p110
      %s113 = sadd.s32 %s112, 1
      %p116 = scmp.eq.s32.totalorder %s15, 1
      %p117 = scmp.ne.s32.totalorder %s112, %s114
      %p118 = scmp.eq.s32.totalorder %s15, 0
      %p119 = por %p117, %p118
      %p120 = scmp.ne.s32.totalorder %s112, %s114
      %p121 = scmp.eq.s32.totalorder %s20, 1
      %p122 = por %p120, %p121
      %p123 = scmp.ne.s32.totalorder %s114, %s115
      %p124 = scmp.eq.s32.totalorder %s20, 0
      %p125 = por %p123, %p124
      %p126 = scmp.ne.s32.totalorder %s114, %s115
      %p127 = scmp.eq.s32.totalorder %s21, 1
      %p128 = por %p126, %p127
      %p130 = scmp.ne.s32.totalorder %s115, %s129
      %p131 = scmp.eq.s32.totalorder %s21, 0
      %p132 = por %p130, %p131
      %s134 = sadd.s32 %s133, 1
      %p137 = scmp.eq.s32.totalorder %s15, 1
      %p138 = scmp.ne.s32.totalorder %s133, %s135
      %p139 = scmp.eq.s32.totalorder %s15, 0
      %p140 = por %p138, %p139
      %p141 = scmp.ne.s32.totalorder %s133, %s135
      %p142 = scmp.eq.s32.totalorder %s20, 1
      %p143 = por %p141, %p142
      %p144 = scmp.ne.s32.totalorder %s135, %s136
      %p145 = scmp.eq.s32.totalorder %s20, 0
      %p146 = por %p144, %p145
      %p147 = scmp.ne.s32.totalorder %s135, %s136
      %p148 = scmp.eq.s32.totalorder %s21, 1
      %p149 = por %p147, %p148
      %p151 = scmp.ne.s32.totalorder %s136, %s150
      %p152 = scmp.eq.s32.totalorder %s21, 0
      %p153 = por %p151, %p152
      %s154 = ssub.s32 %s15, %s22
      %p155 = scmp.eq.s32.totalorder %s154, 0
      %s157 = sadd.s32 %s156, 1
      %s158 = scalar_select %p155, %s156, %s157
      %p161 = pneg %p155
      %p162 = scmp.eq.s32.totalorder %s15, 1
      %p163 = por %p161, %p162
      %p164 = scmp.ne.s32.totalorder %s156, %s159
      %p165 = scmp.eq.s32.totalorder %s15, 0
      %p166 = por %p164, %p165
      %p167 = scmp.ne.s32.totalorder %s156, %s159
      %p168 = scmp.eq.s32.totalorder %s20, 1
      %p169 = por %p167, %p168
      %p170 = scmp.ne.s32.totalorder %s159, %s160
      %p171 = scmp.eq.s32.totalorder %s20, 0
      %p172 = por %p170, %p171
      %p173 = scmp.ne.s32.totalorder %s159, %s160
      %p174 = scmp.eq.s32.totalorder %s21, 1
      %p175 = por %p173, %p174
      %p177 = scmp.ne.s32.totalorder %s160, %s176
      %p178 = scmp.eq.s32.totalorder %s21, 0
      %p179 = por %p177, %p178
      %p180 = scmp.le.s32.totalorder 1, %s15
      %p181 = scmp.lt.s32.totalorder %s15, 3
      %p182 = pnand %p180, %p181
      %p183 = pneg %p182
      // Predicated region
      $region9: #{generator_forward.1} parent=5 // pred_check
        _
      $region10: #{generator_forward.1} parent=5 // pred_check_branch
        %185 = sbr.rel (%p182) target = $region12
      $region11: #{generator_forward.1} parent=5 // pred_region
        %s186 = ssub.s32 %s15, 1
        // Predicated region
        $region13: #{generator_forward.1} parent=11 // pred_check
          %p187 = pneg %p62
        $region14: #{generator_forward.1} parent=11 // pred_check_branch
          %189 = sbr.rel (%p187) target = $region16
        $region15: #{generator_forward.1} parent=11 // pred_region
          _
        $region16: #{generator_forward.1} parent=11 // pred_fallthru
          _
        // Predicated region
        $region17: #{generator_forward.1} parent=11 // pred_check
          %p190 = pneg %p83
        $region18: #{generator_forward.1} parent=11 // pred_check_branch
          %192 = sbr.rel (%p190) target = $region20
        $region19: #{generator_forward.1} parent=11 // pred_region
          _
        $region20: #{generator_forward.1} parent=11 // pred_fallthru
          _
        // Predicated region
        $region21: #{generator_forward.1} parent=11 // pred_check
          %p193 = pneg %p104
        $region22: #{generator_forward.1} parent=11 // pred_check_branch
          %195 = sbr.rel (%p193) target = $region24
        $region23: #{generator_forward.1} parent=11 // pred_region
          _
        $region24: #{generator_forward.1} parent=11 // pred_fallthru
          _
        // Predicated region
        $region25: #{generator_forward.1} parent=11 // pred_check
          %p196 = pneg %p125
        $region26: #{generator_forward.1} parent=11 // pred_check_branch
          %198 = sbr.rel (%p196) target = $region28
        $region27: #{generator_forward.1} parent=11 // pred_region
          _
        $region28: #{generator_forward.1} parent=11 // pred_fallthru
          _
        // Predicated region
        $region29: #{generator_forward.1} parent=11 // pred_check
          %p199 = pneg %p146
        $region30: #{generator_forward.1} parent=11 // pred_check_branch
          %201 = sbr.rel (%p199) target = $region32
        $region31: #{generator_forward.1} parent=11 // pred_region
          _
        $region32: #{generator_forward.1} parent=11 // pred_fallthru
          _
      $region12: #{generator_forward.1} parent=5 // pred_fallthru
        _
      %p202 = scmp.lt.s32.totalorder %s15, 2
      // Predicated region
      $region33: #{generator_forward.1} parent=5 // pred_check
        %p203 = pneg %p202
      $region34: #{generator_forward.1} parent=5 // pred_check_branch
        %205 = sbr.rel (%p203) target = $region36
      $region35: #{generator_forward.1} parent=5 // pred_region
        // Predicated region
        $region37: #{generator_forward.1} parent=35 // pred_check
          %p206 = pneg %p35
        $region38: #{generator_forward.1} parent=35 // pred_check_branch
          %208 = sbr.rel (%p206) target = $region40
        $region39: #{generator_forward.1} parent=35 // pred_region
          %p209 = scmp.lt.s32.totalorder %s15, 1
          %s210 = scalar_select %p209, %s15, 1
          %s211 = smul.addr %s210, 8
          %s212 = scalar_lea.vmem %s0, %s211
        $region40: #{generator_forward.1} parent=35 // pred_fallthru
          _
      $region36: #{generator_forward.1} parent=5 // pred_fallthru
        _
      %p213 = scmp.le.s32.totalorder 1, %s15
      %p214 = scmp.lt.s32.totalorder %s15, 3
      %p215 = pnand %p213, %p214
      %p216 = pneg %p215
      // Predicated region
      $region41: #{generator_forward.1} parent=5 // pred_check
        _
      $region42: #{generator_forward.1} parent=5 // pred_check_branch
        %218 = sbr.rel (%p215) target = $region44
      $region43: #{generator_forward.1} parent=5 // pred_region
        %s219 = ssub.s32 %s15, 1
        %p220 = scmp.lt.s32.totalorder %s20, 1
        %s221 = scalar_select %p220, %s20, 1
        %s222 = smul.addr %s221, 8
        %s223 = scalar_lea.vmem %s0, %s222
        %p224 = pneg %p41
        %p225 = pneg %p38
        %p226 = pneg %p62
        %p227 = pneg %p59
        %p228 = pneg %p83
        %p229 = pneg %p80
        %p230 = pneg %p104
        %p231 = pneg %p101
        %p232 = pneg %p125
        %p233 = pneg %p122
        %p234 = pneg %p146
        %p235 = pneg %p143
        %p236 = pneg %p172
        %p237 = pneg %p169
        %s238 = sand.u32 %s159, 1
        %s239 = scalar_lea.sflag [#allocation3], %s238
        %s240 = sand.u32 %s159, 1
        %s241 = smul.addr %s240, 2
        %s242 = scalar_lea.vmem [#allocation2], %s241
        %p243 = scmp.lt.s32.totalorder %s20, 1
        %s244 = scalar_select %p243, %s20, 1
        %s245 = smul.addr %s244, 8
        %s246 = scalar_lea.vmem %s0, %s245
        %v248 = vld [vmem:[%s246] sm:$0xff]
        %250 = vrot.lane.b32.xlu0 %v248, 127
        %v251 = vpop.permute.xlu0 %250
        %v253 = vld [vmem:[%s1] sm:$0xf]
        %v254 = vld [vmem:[%s1 + $0x4] sm:$0xf]
        %v255 = vld [vmem:[%s1 + $0x8] sm:$0xf]
        %v256 = vld [vmem:[%s1 + $0xc] sm:$0xf]
        %v257 = vpack.c.bf16 %v251, %v248
        %v262 = vunpack.c.l.b16 %v253
        %v263 = vunpack.c.l.b16 %v254
        %v264 = vunpack.c.l.b16 %v255
        %v265 = vunpack.c.l.b16 %v256
        %v266 = vpack.c.b16 %v263, %v262
        %v267 = vpack.c.b16 %v265, %v264
        %vm268 = vcmask 130048
        %v270 = vsel %vm268, %v266, 0
        %v273 = vsel %vm268, %v267, 0
        %275 = vmatprep.subr.bf16.mxu0 0
        %276 = vmatpush1.bf16.msra.mxu0 %v257
        %277 = vmatprep.subr.bf16.mxu0 0
        %278 = vmatpush1.bf16.msra.mxu0 0
        %279 = vmatprep.subr.bf16.mxu0 0
        %280 = vmatpush1.bf16.msra.mxu0 0
        %281 = vmatprep.subr.bf16.mxu0 0
        %282 = vmatpush1.bf16.msra.mxu0 0
        %283 = vmatprep.subr.bf16.mxu0 0
        %284 = vmatpush1.bf16.msra.mxu0 0
        %285 = vmatprep.subr.bf16.mxu0 0
        %286 = vmatpush1.bf16.msra.mxu0 0
        %287 = vmatprep.subr.bf16.mxu0 0
        %288 = vmatpush1.bf16.msra.mxu0 0
        %289 = vmatprep.subr.bf16.mxu0 0
        %290 = vmatpush1.bf16.msra.mxu0 0
        %291 = vmatprep.subr.bf16.mxu0 0
        %292 = vmatpush1.bf16.msra.mxu0 0
        %293 = vmatprep.subr.bf16.mxu0 0
        %294 = vmatpush1.bf16.msra.mxu0 0
        %295 = vmatprep.subr.bf16.mxu0 0
        %296 = vmatpush1.bf16.msra.mxu0 0
        %297 = vmatprep.subr.bf16.mxu0 0
        %298 = vmatpush1.bf16.msra.mxu0 0
        %299 = vmatprep.subr.bf16.mxu0 0
        %300 = vmatpush1.bf16.msra.mxu0 0
        %301 = vmatprep.subr.bf16.mxu0 0
        %302 = vmatpush1.bf16.msra.mxu0 0
        %303 = vmatprep.subr.bf16.mxu0 0
        %304 = vmatpush1.bf16.msra.mxu0 0
        %305 = vmatprep.subr.bf16.mxu0 0
        %306 = vmatpush1.bf16.msra.mxu0 0
        %307 = vmatprep.mubr.bf16.mxu0 0
        %308 = vmatmul.mubr.bf16.gmra.mrb[0].mxu0 %v270
        %v309 = vpop.f32.mrb[0].mxu0
        %v310 = vadd.f32 0.0, %v309
        %v311 = vpop.f32.mrb[0].mxu0
        %v312 = vpop.f32.mrb[0].mxu0
        %v313 = vadd.f32 0.0, %v312
        %v314 = vpop.f32.mrb[0].mxu0
        %315 = vmatprep.mubr.bf16.mxu0 0
        %316 = vmatmul.mubr.bf16.gmra.mrb[0].mxu0 %v273
        %v317 = vpop.f32.mrb[0].mxu0
        %v318 = vadd.f32 0.0, %v317
        %v319 = vpop.f32.mrb[0].mxu0
        %v320 = vpop.f32.mrb[0].mxu0
        %v321 = vadd.f32 0.0, %v320
        %v322 = vpop.f32.mrb[0].mxu0
        %323 = vdwg.mxu0
        %v324 = vlaneseq
        %v325 = vshrl.u32 %v324, 7
        %v326 = vadd.s32 %v325, 8
        %v327 = vlaneseq
        %v328 = vand.u32 %v327, 127
        %v329 = vadd.s32 %v325, 1
        %v330 = vadd.s32 %v326, 1
        %vm331 = vcmp.eq.s32.totalorder %v328, %v329
        %vm332 = vcmp.eq.s32.totalorder %v328, %v330
        %v333 = vsel %vm331, 1, 0
        %v334 = vsel %vm332, 1, 0
        %v335 = vcvt.s32.f32 %v333
        %v336 = vcvt.s32.f32 %v334
        %vm337 = vcmask 72704
        %v339 = vsel %vm337, %v310, 0
        %v342 = vsel %vm337, %v313, 0
        %v345 = vsel %vm337, %v318, 0
        %v348 = vsel %vm337, %v321, 0
        %vm350 = vcmask 1040384
        %v352 = vsel %vm350, %v336, 0
        %354 = vmatprep.subr.mxu0 0.0
        %355 = vmatpush1.msra.mxu0 %v335
        %356 = vmatprep.subr.mxu0 0.0
        %357 = vmatpush1.msra.mxu0 %v352
        %358 = vmatprep.subr.mxu0 0.0
        %359 = vmatpush1.msra.mxu0 0.0
        %360 = vmatprep.subr.mxu0 0.0
        %361 = vmatpush1.msra.mxu0 0.0
        %362 = vmatprep.subr.mxu0 0.0
        %363 = vmatpush1.msra.mxu0 0.0
        %364 = vmatprep.subr.mxu0 0.0
        %365 = vmatpush1.msra.mxu0 0.0
        %366 = vmatprep.subr.mxu0 0.0
        %367 = vmatpush1.msra.mxu0 0.0
        %368 = vmatprep.subr.mxu0 0.0
        %369 = vmatpush1.msra.mxu0 0.0
        %370 = vmatprep.subr.mxu0 0.0
        %371 = vmatpush1.msra.mxu0 0.0
        %372 = vmatprep.subr.mxu0 0.0
        %373 = vmatpush1.msra.mxu0 0.0
        %374 = vmatprep.subr.mxu0 0.0
        %375 = vmatpush1.msra.mxu0 0.0
        %376 = vmatprep.subr.mxu0 0.0
        %377 = vmatpush1.msra.mxu0 0.0
        %378 = vmatprep.subr.mxu0 0.0
        %379 = vmatpush1.msra.mxu0 0.0
        %380 = vmatprep.subr.mxu0 0.0
        %381 = vmatpush1.msra.mxu0 0.0
        %382 = vmatprep.subr.mxu0 0.0
        %383 = vmatpush1.msra.mxu0 0.0
        %384 = vmatprep.subr.mxu0 0.0
        %385 = vmatpush1.msra.mxu0 0.0
        %386 = vmatprep.subr.mxu0 0.0
        %387 = vmatpush1.msra.mxu0 0.0
        %388 = vmatprep.subr.mxu0 0.0
        %389 = vmatpush1.msra.mxu0 0.0
        %390 = vmatprep.subr.mxu0 0.0
        %391 = vmatpush1.msra.mxu0 0.0
        %392 = vmatprep.subr.mxu0 0.0
        %393 = vmatpush1.msra.mxu0 0.0
        %394 = vmatprep.subr.mxu0 0.0
        %395 = vmatpush1.msra.mxu0 0.0
        %396 = vmatprep.subr.mxu0 0.0
        %397 = vmatpush1.msra.mxu0 0.0
        %398 = vmatprep.subr.mxu0 0.0
        %399 = vmatpush1.msra.mxu0 0.0
        %400 = vmatprep.subr.mxu0 0.0
        %401 = vmatpush1.msra.mxu0 0.0
        %402 = vmatprep.subr.mxu0 0.0
        %403 = vmatpush1.msra.mxu0 0.0
        %404 = vmatprep.subr.mxu0 0.0
        %405 = vmatpush1.msra.mxu0 0.0
        %406 = vmatprep.subr.mxu0 0.0
        %407 = vmatpush1.msra.mxu0 0.0
        %408 = vmatprep.subr.mxu0 0.0
        %409 = vmatpush1.msra.mxu0 0.0
        %410 = vmatprep.subr.mxu0 0.0
        %411 = vmatpush1.msra.mxu0 0.0
        %412 = vmatprep.subr.mxu0 0.0
        %413 = vmatpush1.msra.mxu0 0.0
        %414 = vmatprep.subr.mxu0 0.0
        %415 = vmatpush1.msra.mxu0 0.0
        %416 = vmatprep.subr.mxu0 0.0
        %417 = vmatpush1.msra.mxu0 0.0
        %418 = vmatprep.mubr.f32.mxu0 0.0
        %419 = vmatmul.mubr.f32.gmra.mrb[0].mxu0 %v339
        %v420 = vpop.f32.mrb[0].mxu0
        %v421 = vadd.f32 0.0, %v420
        %v422 = vpop.f32.mrb[0].mxu0
        %423 = vmatprep.mubr.f32.mxu0 0.0
        %424 = vmatmul.mubr.f32.gmra.mrb[0].mxu0 %v342
        %v425 = vpop.f32.mrb[0].mxu0
        %v426 = vadd.f32 0.0, %v425
        %v427 = vpop.f32.mrb[0].mxu0
        %428 = vmatprep.mubr.f32.mxu0 0.0
        %429 = vmatmul.mubr.f32.gmra.mrb[0].mxu0 %v345
        %v430 = vpop.f32.mrb[0].mxu0
        %v431 = vadd.f32 0.0, %v430
        %v432 = vpop.f32.mrb[0].mxu0
        %433 = vmatprep.mubr.f32.mxu0 0.0
        %434 = vmatmul.mubr.f32.gmra.mrb[0].mxu0 %v348
        %v435 = vpop.f32.mrb[0].mxu0
        %v436 = vadd.f32 0.0, %v435
        %v437 = vpop.f32.mrb[0].mxu0
        %438 = vdwg.mxu0
        %443 = vrot.lane.b32.xlu0 %v421, 127
        %v444 = vpop.permute.xlu0 %443
        %445 = vrot.lane.b32.xlu0 %v426, 127
        %v446 = vpop.permute.xlu0 %445
        %447 = vrot.lane.b32.xlu0 %v431, 127
        %v448 = vpop.permute.xlu0 %447
        %449 = vrot.lane.b32.xlu0 %v436, 127
        %v450 = vpop.permute.xlu0 %449
        %455 = vrot.lane.b32.xlu0 %v421, 126
        %v456 = vpop.permute.xlu0 %455
        %457 = vrot.lane.b32.xlu0 %v426, 126
        %v458 = vpop.permute.xlu0 %457
        %459 = vrot.lane.b32.xlu0 %v431, 126
        %v460 = vpop.permute.xlu0 %459
        %461 = vrot.lane.b32.xlu0 %v436, 126
        %v462 = vpop.permute.xlu0 %461
        %v467 = vld [vmem:[%s2] sm:$0xf]
        %v468 = vld [vmem:[%s2 + $0x4] sm:$0xf]
        %v469 = vpack.c.bf16 %v426, %v421
        %v470 = vpack.c.bf16 %v436, %v431
        %v471 = vpack.c.bf16 %v446, %v444
        %v472 = vpack.c.bf16 %v450, %v448
        %v473 = vpack.c.bf16 %v458, %v456
        %v474 = vpack.c.bf16 %v462, %v460
        %v477 = vunpack.c.l.b16 %v467
        %v478 = vunpack.c.l.b16 %v468
        %v479 = vpack.c.b16 %v478, %v477
        %vm480 = vcmask 785408
        %v482 = vsel %vm480, %v479, 0
        %484 = vmatprep.subr.bf16.mxu0 0
        %485 = vmatpush1.bf16.msra.mxu0 %v469
        %486 = vmatprep.subr.bf16.mxu0 0
        %487 = vmatpush1.bf16.msra.mxu0 %v470
        %488 = vmatprep.subr.bf16.mxu0 0
        %489 = vmatpush1.bf16.msra.mxu0 %v471
        %490 = vmatprep.subr.bf16.mxu0 0
        %491 = vmatpush1.bf16.msra.mxu0 %v472
        %492 = vmatprep.subr.bf16.mxu0 0
        %493 = vmatpush1.bf16.msra.mxu0 %v473
        %494 = vmatprep.subr.bf16.mxu0 0
        %495 = vmatpush1.bf16.msra.mxu0 %v474
        %496 = vmatprep.subr.bf16.mxu0 0
        %497 = vmatpush1.bf16.msra.mxu0 0
        %498 = vmatprep.subr.bf16.mxu0 0
        %499 = vmatpush1.bf16.msra.mxu0 0
        %500 = vmatprep.subr.bf16.mxu0 0
        %501 = vmatpush1.bf16.msra.mxu0 0
        %502 = vmatprep.subr.bf16.mxu0 0
        %503 = vmatpush1.bf16.msra.mxu0 0
        %504 = vmatprep.subr.bf16.mxu0 0
        %505 = vmatpush1.bf16.msra.mxu0 0
        %506 = vmatprep.subr.bf16.mxu0 0
        %507 = vmatpush1.bf16.msra.mxu0 0
        %508 = vmatprep.subr.bf16.mxu0 0
        %509 = vmatpush1.bf16.msra.mxu0 0
        %510 = vmatprep.subr.bf16.mxu0 0
        %511 = vmatpush1.bf16.msra.mxu0 0
        %512 = vmatprep.subr.bf16.mxu0 0
        %513 = vmatpush1.bf16.msra.mxu0 0
        %514 = vmatprep.subr.bf16.mxu0 0
        %515 = vmatpush1.bf16.msra.mxu0 0
        %516 = vmatprep.mubr.bf16.mxu0 0
        %517 = vmatmul.mubr.bf16.gmra.mrb[0].mxu0 %v482
        %v518 = vpop.f32.mrb[0].mxu0
        %v519 = vadd.f32 0.0, %v518
        %v520 = vpop.f32.mrb[0].mxu0
        %v521 = vpop.f32.mrb[0].mxu0
        %v522 = vadd.f32 0.0, %v521
        %v523 = vpop.f32.mrb[0].mxu0
        %524 = vdwg.mxu0
        %v525 = vld [vmem:[%s3] sm:$0xf]
        %v526 = vld [vmem:[%s3 + $0x4] sm:$0xf]
        %v529 = vunpack.c.l.b16 %v525
        %v530 = vunpack.c.l.b16 %v526
        %v531 = vpack.c.b16 %v530, %v529
        %vm532 = vcmask 523264
        %v534 = vsel %vm532, %v531, 0
        %536 = vmatprep.subr.bf16.mxu0 0
        %537 = vmatpush1.bf16.msra.mxu0 %v469
        %538 = vmatprep.subr.bf16.mxu0 0
        %539 = vmatpush1.bf16.msra.mxu0 %v470
        %540 = vmatprep.subr.bf16.mxu0 0
        %541 = vmatpush1.bf16.msra.mxu0 %v471
        %542 = vmatprep.subr.bf16.mxu0 0
        %543 = vmatpush1.bf16.msra.mxu0 %v472
        %544 = vmatprep.subr.bf16.mxu0 0
        %545 = vmatpush1.bf16.msra.mxu0 0
        %546 = vmatprep.subr.bf16.mxu0 0
        %547 = vmatpush1.bf16.msra.mxu0 0
        %548 = vmatprep.subr.bf16.mxu0 0
        %549 = vmatpush1.bf16.msra.mxu0 0
        %550 = vmatprep.subr.bf16.mxu0 0
        %551 = vmatpush1.bf16.msra.mxu0 0
        %552 = vmatprep.subr.bf16.mxu0 0
        %553 = vmatpush1.bf16.msra.mxu0 0
        %554 = vmatprep.subr.bf16.mxu0 0
        %555 = vmatpush1.bf16.msra.mxu0 0
        %556 = vmatprep.subr.bf16.mxu0 0
        %557 = vmatpush1.bf16.msra.mxu0 0
        %558 = vmatprep.subr.bf16.mxu0 0
        %559 = vmatpush1.bf16.msra.mxu0 0
        %560 = vmatprep.subr.bf16.mxu0 0
        %561 = vmatpush1.bf16.msra.mxu0 0
        %562 = vmatprep.subr.bf16.mxu0 0
        %563 = vmatpush1.bf16.msra.mxu0 0
        %564 = vmatprep.subr.bf16.mxu0 0
        %565 = vmatpush1.bf16.msra.mxu0 0
        %566 = vmatprep.subr.bf16.mxu0 0
        %567 = vmatpush1.bf16.msra.mxu0 0
        %568 = vmatprep.mubr.bf16.mxu0 0
        %569 = vmatmul.mubr.bf16.gmra.mrb[0].mxu0 %v534
        %v570 = vpop.f32.mrb[0].mxu0
        %v571 = vadd.f32 0.0, %v570
        %v572 = vpop.f32.mrb[0].mxu0
        %v573 = vpop.f32.mrb[0].mxu0
        %v574 = vadd.f32 0.0, %v573
        %v575 = vpop.f32.mrb[0].mxu0
        %576 = vdwg.mxu0
        %v577 = vmul.u32 %v325, 2
        %v578 = vmul.u32 %v326, 2
        %v579 = vadd.s32 %v577, 1
        %v580 = vadd.s32 %v578, 1
        %vm581 = vcmp.eq.s32.totalorder %v328, %v579
        %vm582 = vcmp.eq.s32.totalorder %v328, %v580
        %v583 = vsel %vm581, 1, 0
        %v584 = vsel %vm582, 1, 0
        %v585 = vcvt.s32.f32 %v583
        %v586 = vcvt.s32.f32 %v584
        %v587 = vadd.s32 %v577, 2
        %v588 = vadd.s32 %v578, 2
        %vm589 = vcmp.eq.s32.totalorder %v328, %v587
        %vm590 = vcmp.eq.s32.totalorder %v328, %v588
        %v591 = vsel %vm589, 1, 0
        %v592 = vsel %vm590, 1, 0
        %v593 = vcvt.s32.f32 %v591
        %v594 = vcvt.s32.f32 %v592
        %v596 = vsel %vm337, %v519, 0
        %v599 = vsel %vm337, %v522, 0
        %v602 = vsel %vm350, %v594, 0
        %604 = vmatprep.subr.mxu0 0.0
        %605 = vmatpush1.msra.mxu0 %v593
        %606 = vmatprep.subr.mxu0 0.0
        %607 = vmatpush1.msra.mxu0 %v602
        %608 = vmatprep.subr.mxu0 0.0
        %609 = vmatpush1.msra.mxu0 0.0
        %610 = vmatprep.subr.mxu0 0.0
        %611 = vmatpush1.msra.mxu0 0.0
        %612 = vmatprep.subr.mxu0 0.0
        %613 = vmatpush1.msra.mxu0 0.0
        %614 = vmatprep.subr.mxu0 0.0
        %615 = vmatpush1.msra.mxu0 0.0
        %616 = vmatprep.subr.mxu0 0.0
        %617 = vmatpush1.msra.mxu0 0.0
        %618 = vmatprep.subr.mxu0 0.0
        %619 = vmatpush1.msra.mxu0 0.0
        %620 = vmatprep.subr.mxu0 0.0
        %621 = vmatpush1.msra.mxu0 0.0
        %622 = vmatprep.subr.mxu0 0.0
        %623 = vmatpush1.msra.mxu0 0.0
        %624 = vmatprep.subr.mxu0 0.0
        %625 = vmatpush1.msra.mxu0 0.0
        %626 = vmatprep.subr.mxu0 0.0
        %627 = vmatpush1.msra.mxu0 0.0
        %628 = vmatprep.subr.mxu0 0.0
        %629 = vmatpush1.msra.mxu0 0.0
        %630 = vmatprep.subr.mxu0 0.0
        %631 = vmatpush1.msra.mxu0 0.0
        %632 = vmatprep.subr.mxu0 0.0
        %633 = vmatpush1.msra.mxu0 0.0
        %634 = vmatprep.subr.mxu0 0.0
        %635 = vmatpush1.msra.mxu0 0.0
        %636 = vmatprep.subr.mxu0 0.0
        %637 = vmatpush1.msra.mxu0 0.0
        %638 = vmatprep.subr.mxu0 0.0
        %639 = vmatpush1.msra.mxu0 0.0
        %640 = vmatprep.subr.mxu0 0.0
        %641 = vmatpush1.msra.mxu0 0.0
        %642 = vmatprep.subr.mxu0 0.0
        %643 = vmatpush1.msra.mxu0 0.0
        %644 = vmatprep.subr.mxu0 0.0
        %645 = vmatpush1.msra.mxu0 0.0
        %646 = vmatprep.subr.mxu0 0.0
        %647 = vmatpush1.msra.mxu0 0.0
        %648 = vmatprep.subr.mxu0 0.0
        %649 = vmatpush1.msra.mxu0 0.0
        %650 = vmatprep.subr.mxu0 0.0
        %651 = vmatpush1.msra.mxu0 0.0
        %652 = vmatprep.subr.mxu0 0.0
        %653 = vmatpush1.msra.mxu0 0.0
        %654 = vmatprep.subr.mxu0 0.0
        %655 = vmatpush1.msra.mxu0 0.0
        %656 = vmatprep.subr.mxu0 0.0
        %657 = vmatpush1.msra.mxu0 0.0
        %658 = vmatprep.subr.mxu0 0.0
        %659 = vmatpush1.msra.mxu0 0.0
        %660 = vmatprep.subr.mxu0 0.0
        %661 = vmatpush1.msra.mxu0 0.0
        %662 = vmatprep.subr.mxu0 0.0
        %663 = vmatpush1.msra.mxu0 0.0
        %664 = vmatprep.subr.mxu0 0.0
        %665 = vmatpush1.msra.mxu0 0.0
        %666 = vmatprep.subr.mxu0 0.0
        %667 = vmatpush1.msra.mxu0 0.0
        %668 = vmatprep.mubr.f32.mxu0 0.0
        %669 = vmatmul.mubr.f32.gmra.mrb[0].mxu0 %v596
        %v670 = vpop.f32.mrb[0].mxu0
        %v671 = vadd.f32 0.0, %v670
        %v672 = vpop.f32.mrb[0].mxu0
        %673 = vmatprep.mubr.f32.mxu0 0.0
        %674 = vmatmul.mubr.f32.gmra.mrb[0].mxu0 %v599
        %v675 = vpop.f32.mrb[0].mxu0
        %v676 = vadd.f32 0.0, %v675
        %v677 = vpop.f32.mrb[0].mxu0
        %678 = vdwg.mxu0
        %vm679 = vcmask 80896
        %v681 = vsel %vm679, %v571, 0
        %v684 = vsel %vm679, %v574, 0
        %vm686 = vcmask 1041408
        %v688 = vsel %vm686, %v586, 0
        %690 = vmatprep.subr.mxu0 0.0
        %691 = vmatpush1.msra.mxu0 %v585
        %692 = vmatprep.subr.mxu0 0.0
        %693 = vmatpush1.msra.mxu0 %v688
        %694 = vmatprep.subr.mxu0 0.0
        %695 = vmatpush1.msra.mxu0 0.0
        %696 = vmatprep.subr.mxu0 0.0
        %697 = vmatpush1.msra.mxu0 0.0
        %698 = vmatprep.subr.mxu0 0.0
        %699 = vmatpush1.msra.mxu0 0.0
        %700 = vmatprep.subr.mxu0 0.0
        %701 = vmatpush1.msra.mxu0 0.0
        %702 = vmatprep.subr.mxu0 0.0
        %703 = vmatpush1.msra.mxu0 0.0
        %704 = vmatprep.subr.mxu0 0.0
        %705 = vmatpush1.msra.mxu0 0.0
        %706 = vmatprep.subr.mxu0 0.0
        %707 = vmatpush1.msra.mxu0 0.0
        %708 = vmatprep.subr.mxu0 0.0
        %709 = vmatpush1.msra.mxu0 0.0
        %710 = vmatprep.subr.mxu0 0.0
        %711 = vmatpush1.msra.mxu0 0.0
        %712 = vmatprep.subr.mxu0 0.0
        %713 = vmatpush1.msra.mxu0 0.0
        %714 = vmatprep.subr.mxu0 0.0
        %715 = vmatpush1.msra.mxu0 0.0
        %716 = vmatprep.subr.mxu0 0.0
        %717 = vmatpush1.msra.mxu0 0.0
        %718 = vmatprep.subr.mxu0 0.0
        %719 = vmatpush1.msra.mxu0 0.0
        %720 = vmatprep.subr.mxu0 0.0
        %721 = vmatpush1.msra.mxu0 0.0
        %722 = vmatprep.subr.mxu0 0.0
        %723 = vmatpush1.msra.mxu0 0.0
        %724 = vmatprep.subr.mxu0 0.0
        %725 = vmatpush1.msra.mxu0 0.0
        %726 = vmatprep.subr.mxu0 0.0
        %727 = vmatpush1.msra.mxu0 0.0
        %728 = vmatprep.subr.mxu0 0.0
        %729 = vmatpush1.msra.mxu0 0.0
        %730 = vmatprep.subr.mxu0 0.0
        %731 = vmatpush1.msra.mxu0 0.0
        %732 = vmatprep.subr.mxu0 0.0
        %733 = vmatpush1.msra.mxu0 0.0
        %734 = vmatprep.subr.mxu0 0.0
        %735 = vmatpush1.msra.mxu0 0.0
        %736 = vmatprep.subr.mxu0 0.0
        %737 = vmatpush1.msra.mxu0 0.0
        %738 = vmatprep.subr.mxu0 0.0
        %739 = vmatpush1.msra.mxu0 0.0
        %740 = vmatprep.subr.mxu0 0.0
        %741 = vmatpush1.msra.mxu0 0.0
        %742 = vmatprep.subr.mxu0 0.0
        %743 = vmatpush1.msra.mxu0 0.0
        %744 = vmatprep.subr.mxu0 0.0
        %745 = vmatpush1.msra.mxu0 0.0
        %746 = vmatprep.subr.mxu0 0.0
        %747 = vmatpush1.msra.mxu0 0.0
        %748 = vmatprep.subr.mxu0 0.0
        %749 = vmatpush1.msra.mxu0 0.0
        %750 = vmatprep.subr.mxu0 0.0
        %751 = vmatpush1.msra.mxu0 0.0
        %752 = vmatprep.subr.mxu0 0.0
        %753 = vmatpush1.msra.mxu0 0.0
        %754 = vmatprep.mubr.f32.mxu0 0.0
        %755 = vmatmul.mubr.f32.gmra.mrb[0].mxu0 %v681
        %v756 = vpop.f32.mrb[0].mxu0
        %v757 = vadd.f32 %v671, %v756
        %v758 = vpop.f32.mrb[0].mxu0
        %759 = vmatprep.mubr.f32.mxu0 0.0
        %760 = vmatmul.mubr.f32.gmra.mrb[0].mxu0 %v684
        %v761 = vpop.f32.mrb[0].mxu0
        %v762 = vadd.f32 %v676, %v761
        %v763 = vpop.f32.mrb[0].mxu0
        %764 = vdwg.mxu0
        %767 = vrot.lane.b32.xlu0 %v757, 127
        %v768 = vpop.permute.xlu0 %767
        %769 = vrot.lane.b32.xlu0 %v762, 127
        %v770 = vpop.permute.xlu0 %769
        %v773 = vld [vmem:[%s4] sm:$0xf]
        %v774 = vld [vmem:[%s4 + $0x4] sm:$0xf]
        %v775 = vpack.c.bf16 %v762, %v757
        %v776 = vpack.c.bf16 %v770, %v768
        %v779 = vunpack.c.l.b16 %v773
        %v780 = vunpack.c.l.b16 %v774
        %v781 = vpack.c.b16 %v780, %v779
        %vm782 = vcmask 261120
        %v784 = vsel %vm782, %v781, 0
        %786 = vmatprep.subr.bf16.mxu0 0
        %787 = vmatpush1.bf16.msra.mxu0 %v775
        %788 = vmatprep.subr.bf16.mxu0 0
        %789 = vmatpush1.bf16.msra.mxu0 %v776
        %790 = vmatprep.subr.bf16.mxu0 0
        %791 = vmatpush1.bf16.msra.mxu0 0
        %792 = vmatprep.subr.bf16.mxu0 0
        %793 = vmatpush1.bf16.msra.mxu0 0
        %794 = vmatprep.subr.bf16.mxu0 0
        %795 = vmatpush1.bf16.msra.mxu0 0
        %796 = vmatprep.subr.bf16.mxu0 0
        %797 = vmatpush1.bf16.msra.mxu0 0
        %798 = vmatprep.subr.bf16.mxu0 0
        %799 = vmatpush1.bf16.msra.mxu0 0
        %800 = vmatprep.subr.bf16.mxu0 0
        %801 = vmatpush1.bf16.msra.mxu0 0
        %802 = vmatprep.subr.bf16.mxu0 0
        %803 = vmatpush1.bf16.msra.mxu0 0
        %804 = vmatprep.subr.bf16.mxu0 0
        %805 = vmatpush1.bf16.msra.mxu0 0
        %806 = vmatprep.subr.bf16.mxu0 0
        %807 = vmatpush1.bf16.msra.mxu0 0
        %808 = vmatprep.subr.bf16.mxu0 0
        %809 = vmatpush1.bf16.msra.mxu0 0
        %810 = vmatprep.subr.bf16.mxu0 0
        %811 = vmatpush1.bf16.msra.mxu0 0
        %812 = vmatprep.subr.bf16.mxu0 0
        %813 = vmatpush1.bf16.msra.mxu0 0
        %814 = vmatprep.subr.bf16.mxu0 0
        %815 = vmatpush1.bf16.msra.mxu0 0
        %816 = vmatprep.subr.bf16.mxu0 0
        %817 = vmatpush1.bf16.msra.mxu0 0
        %818 = vmatprep.mubr.bf16.mxu0 0
        %819 = vmatmul.mubr.bf16.gmra.mrb[0].mxu0 %v784
        %v820 = vpop.f32.mrb[0].mxu0
        %v821 = vadd.f32 0.0, %v820
        %v822 = vpop.f32.mrb[0].mxu0
        %v823 = vpop.f32.mrb[0].mxu0
        %v824 = vadd.f32 0.0, %v823
        %v825 = vpop.f32.mrb[0].mxu0
        %826 = vdwg.mxu0
        %v827 = vadd.s32 %v325, 16
        %v828 = vmul.u32 %v827, 2
        %vm829 = vcmp.eq.s32.totalorder %v328, %v577
        %vm830 = vcmp.eq.s32.totalorder %v328, %v578
        %vm831 = vcmp.eq.s32.totalorder %v328, %v828
        %v832 = vsel %vm829, 1, 0
        %v833 = vsel %vm830, 1, 0
        %v834 = vsel %vm831, 1, 0
        %v835 = vcvt.s32.f32 %v832
        %v836 = vcvt.s32.f32 %v833
        %v837 = vcvt.s32.f32 %v834
        %v838 = vadd.s32 %v828, 1
        %vm839 = vcmp.eq.s32.totalorder %v328, %v838
        %v840 = vsel %vm839, 1, 0
        %v841 = vcvt.s32.f32 %v840
        %vm842 = vcmask 162816
        %v844 = vsel %vm842, %v824, 0
        %vm846 = vcmask 1043456
        %v848 = vsel %vm846, %v841, 0
        %850 = vmatprep.subr.mxu0 0.0
        %851 = vmatpush1.msra.mxu0 %v585
        %852 = vmatprep.subr.mxu0 0.0
        %853 = vmatpush1.msra.mxu0 %v586
        %854 = vmatprep.subr.mxu0 0.0
        %855 = vmatpush1.msra.mxu0 %v848
        %856 = vmatprep.subr.mxu0 0.0
        %857 = vmatpush1.msra.mxu0 0.0
        %858 = vmatprep.subr.mxu0 0.0
        %859 = vmatpush1.msra.mxu0 0.0
        %860 = vmatprep.subr.mxu0 0.0
        %861 = vmatpush1.msra.mxu0 0.0
        %862 = vmatprep.subr.mxu0 0.0
        %863 = vmatpush1.msra.mxu0 0.0
        %864 = vmatprep.subr.mxu0 0.0
        %865 = vmatpush1.msra.mxu0 0.0
        %866 = vmatprep.subr.mxu0 0.0
        %867 = vmatpush1.msra.mxu0 0.0
        %868 = vmatprep.subr.mxu0 0.0
        %869 = vmatpush1.msra.mxu0 0.0
        %870 = vmatprep.subr.mxu0 0.0
        %871 = vmatpush1.msra.mxu0 0.0
        %872 = vmatprep.subr.mxu0 0.0
        %873 = vmatpush1.msra.mxu0 0.0
        %874 = vmatprep.subr.mxu0 0.0
        %875 = vmatpush1.msra.mxu0 0.0
        %876 = vmatprep.subr.mxu0 0.0
        %877 = vmatpush1.msra.mxu0 0.0
        %878 = vmatprep.subr.mxu0 0.0
        %879 = vmatpush1.msra.mxu0 0.0
        %880 = vmatprep.subr.mxu0 0.0
        %881 = vmatpush1.msra.mxu0 0.0
        %882 = vmatprep.subr.mxu0 0.0
        %883 = vmatpush1.msra.mxu0 0.0
        %884 = vmatprep.subr.mxu0 0.0
        %885 = vmatpush1.msra.mxu0 0.0
        %886 = vmatprep.subr.mxu0 0.0
        %887 = vmatpush1.msra.mxu0 0.0
        %888 = vmatprep.subr.mxu0 0.0
        %889 = vmatpush1.msra.mxu0 0.0
        %890 = vmatprep.subr.mxu0 0.0
        %891 = vmatpush1.msra.mxu0 0.0
        %892 = vmatprep.subr.mxu0 0.0
        %893 = vmatpush1.msra.mxu0 0.0
        %894 = vmatprep.subr.mxu0 0.0
        %895 = vmatpush1.msra.mxu0 0.0
        %896 = vmatprep.subr.mxu0 0.0
        %897 = vmatpush1.msra.mxu0 0.0
        %898 = vmatprep.subr.mxu0 0.0
        %899 = vmatpush1.msra.mxu0 0.0
        %900 = vmatprep.subr.mxu0 0.0
        %901 = vmatpush1.msra.mxu0 0.0
        %902 = vmatprep.subr.mxu0 0.0
        %903 = vmatpush1.msra.mxu0 0.0
        %904 = vmatprep.subr.mxu0 0.0
        %905 = vmatpush1.msra.mxu0 0.0
        %906 = vmatprep.subr.mxu0 0.0
        %907 = vmatpush1.msra.mxu0 0.0
        %908 = vmatprep.subr.mxu0 0.0
        %909 = vmatpush1.msra.mxu0 0.0
        %910 = vmatprep.subr.mxu0 0.0
        %911 = vmatpush1.msra.mxu0 0.0
        %912 = vmatprep.subr.mxu0 0.0
        %913 = vmatpush1.msra.mxu0 0.0
        %914 = vmatprep.mubr.f32.mxu0 0.0
        %915 = vmatmul.mubr.f32.gmra.mrb[0].mxu0 %v844
        %v916 = vpop.f32.mrb[0].mxu0
        %v917 = vadd.f32 0.0, %v916
        %v918 = vpop.f32.mrb[0].mxu0
        %919 = vdwg.mxu0
        %v921 = vsel %vm842, %v821, 0
        %v924 = vsel %vm846, %v837, 0
        %926 = vmatprep.subr.mxu0 0.0
        %927 = vmatpush1.msra.mxu0 %v835
        %928 = vmatprep.subr.mxu0 0.0
        %929 = vmatpush1.msra.mxu0 %v836
        %930 = vmatprep.subr.mxu0 0.0
        %931 = vmatpush1.msra.mxu0 %v924
        %932 = vmatprep.subr.mxu0 0.0
        %933 = vmatpush1.msra.mxu0 0.0
        %934 = vmatprep.subr.mxu0 0.0
        %935 = vmatpush1.msra.mxu0 0.0
        %936 = vmatprep.subr.mxu0 0.0
        %937 = vmatpush1.msra.mxu0 0.0
        %938 = vmatprep.subr.mxu0 0.0
        %939 = vmatpush1.msra.mxu0 0.0
        %940 = vmatprep.subr.mxu0 0.0
        %941 = vmatpush1.msra.mxu0 0.0
        %942 = vmatprep.subr.mxu0 0.0
        %943 = vmatpush1.msra.mxu0 0.0
        %944 = vmatprep.subr.mxu0 0.0
        %945 = vmatpush1.msra.mxu0 0.0
        %946 = vmatprep.subr.mxu0 0.0
        %947 = vmatpush1.msra.mxu0 0.0
        %948 = vmatprep.subr.mxu0 0.0
        %949 = vmatpush1.msra.mxu0 0.0
        %950 = vmatprep.subr.mxu0 0.0
        %951 = vmatpush1.msra.mxu0 0.0
        %952 = vmatprep.subr.mxu0 0.0
        %953 = vmatpush1.msra.mxu0 0.0
        %954 = vmatprep.subr.mxu0 0.0
        %955 = vmatpush1.msra.mxu0 0.0
        %956 = vmatprep.subr.mxu0 0.0
        %957 = vmatpush1.msra.mxu0 0.0
        %958 = vmatprep.subr.mxu0 0.0
        %959 = vmatpush1.msra.mxu0 0.0
        %960 = vmatprep.subr.mxu0 0.0
        %961 = vmatpush1.msra.mxu0 0.0
        %962 = vmatprep.subr.mxu0 0.0
        %963 = vmatpush1.msra.mxu0 0.0
        %964 = vmatprep.subr.mxu0 0.0
        %965 = vmatpush1.msra.mxu0 0.0
        %966 = vmatprep.subr.mxu0 0.0
        %967 = vmatpush1.msra.mxu0 0.0
        %968 = vmatprep.subr.mxu0 0.0
        %969 = vmatpush1.msra.mxu0 0.0
        %970 = vmatprep.subr.mxu0 0.0
        %971 = vmatpush1.msra.mxu0 0.0
        %972 = vmatprep.subr.mxu0 0.0
        %973 = vmatpush1.msra.mxu0 0.0
        %974 = vmatprep.subr.mxu0 0.0
        %975 = vmatpush1.msra.mxu0 0.0
        %976 = vmatprep.subr.mxu0 0.0
        %977 = vmatpush1.msra.mxu0 0.0
        %978 = vmatprep.subr.mxu0 0.0
        %979 = vmatpush1.msra.mxu0 0.0
        %980 = vmatprep.subr.mxu0 0.0
        %981 = vmatpush1.msra.mxu0 0.0
        %982 = vmatprep.subr.mxu0 0.0
        %983 = vmatpush1.msra.mxu0 0.0
        %984 = vmatprep.subr.mxu0 0.0
        %985 = vmatpush1.msra.mxu0 0.0
        %986 = vmatprep.subr.mxu0 0.0
        %987 = vmatpush1.msra.mxu0 0.0
        %988 = vmatprep.subr.mxu0 0.0
        %989 = vmatpush1.msra.mxu0 0.0
        %990 = vmatprep.mubr.f32.mxu0 0.0
        %991 = vmatmul.mubr.f32.gmra.mrb[0].mxu0 %v921
        %v992 = vpop.f32.mrb[0].mxu0
        %v993 = vadd.f32 %v917, %v992
        %v994 = vpop.f32.mrb[0].mxu0
        %995 = vdwg.mxu0
        %v996 = vld [vmem:[%s5] sm:$0x3]
        %v997 = vpack.c.bf16 %v993, %v993
        %vm998 = vcmask 64512
        %v1000 = vsel %vm998, %v996, 0
        %v1003 = vsel %vm846, %v997, 0
        %1005 = vmatprep.subr.bf16.mxu0 0
        %1006 = vmatpush1.bf16.msra.mxu0 %v1003
        %1007 = vmatprep.subr.bf16.mxu0 0
        %1008 = vmatpush1.bf16.msra.mxu0 0
        %1009 = vmatprep.subr.bf16.mxu0 0
        %1010 = vmatpush1.bf16.msra.mxu0 0
        %1011 = vmatprep.subr.bf16.mxu0 0
        %1012 = vmatpush1.bf16.msra.mxu0 0
        %1013 = vmatprep.subr.bf16.mxu0 0
        %1014 = vmatpush1.bf16.msra.mxu0 0
        %1015 = vmatprep.subr.bf16.mxu0 0
        %1016 = vmatpush1.bf16.msra.mxu0 0
        %1017 = vmatprep.subr.bf16.mxu0 0
        %1018 = vmatpush1.bf16.msra.mxu0 0
        %1019 = vmatprep.subr.bf16.mxu0 0
        %1020 = vmatpush1.bf16.msra.mxu0 0
        %1021 = vmatprep.subr.bf16.mxu0 0
        %1022 = vmatpush1.bf16.msra.mxu0 0
        %1023 = vmatprep.subr.bf16.mxu0 0
        %1024 = vmatpush1.bf16.msra.mxu0 0
        %1025 = vmatprep.subr.bf16.mxu0 0
        %1026 = vmatpush1.bf16.msra.mxu0 0
        %1027 = vmatprep.subr.bf16.mxu0 0
        %1028 = vmatpush1.bf16.msra.mxu0 0
        %1029 = vmatprep.subr.bf16.mxu0 0
        %1030 = vmatpush1.bf16.msra.mxu0 0
        %1031 = vmatprep.subr.bf16.mxu0 0
        %1032 = vmatpush1.bf16.msra.mxu0 0
        %1033 = vmatprep.subr.bf16.mxu0 0
        %1034 = vmatpush1.bf16.msra.mxu0 0
        %1035 = vmatprep.subr.bf16.mxu0 0
        %1036 = vmatpush1.bf16.msra.mxu0 0
        %1037 = vmatprep.mubr.bf16.mxu0 0
        %1038 = vmatmul.mubr.bf16.gmra.mrb[0].mxu0 %v1000
        %v1039 = vpop.f32.mrb[0].mxu0
        %v1040 = vadd.f32 0.0, %v1039
        %v1041 = vpop.f32.mrb[0].mxu0
        %v1042 = vpop.f32.mrb[0].mxu0
        %v1043 = vpop.f32.mrb[0].mxu0
        %1044 = vdwg.mxu0
        %v1045 = vadd.s32 %v325, 24
        %v1046 = vadd.s32 %v325, 32
        %v1047 = vmul.u32 %v1045, 2
        %v1048 = vmul.u32 %v1046, 2
        %vm1049 = vcmp.eq.s32.totalorder %v328, %v1047
        %vm1050 = vcmp.eq.s32.totalorder %v328, %v1048
        %v1051 = vsel %vm1049, 1, 0
        %v1052 = vsel %vm1050, 1, 0
        %v1053 = vcvt.s32.f32 %v1051
        %v1054 = vcvt.s32.f32 %v1052
        %v1055 = vadd.s32 %v1047, 1
        %v1056 = vadd.s32 %v1048, 1
        %vm1057 = vcmp.eq.s32.totalorder %v328, %v1055
        %vm1058 = vcmp.eq.s32.totalorder %v328, %v1056
        %v1059 = vsel %vm1057, 1, 0
        %v1060 = vsel %vm1058, 1, 0
        %v1061 = vcvt.s32.f32 %v1059
        %v1062 = vcvt.s32.f32 %v1060
        %v1064 = vrot.slane %v1040, 2
        %vm1065 = vcmask 326656
        %v1066 = vsel %vm1065, %v1064, 0
        %1068 = vmatprep.subr.mxu0 0.0
        %1069 = vmatpush1.msra.mxu0 %v585
        %1070 = vmatprep.subr.mxu0 0.0
        %1071 = vmatpush1.msra.mxu0 %v586
        %1072 = vmatprep.subr.mxu0 0.0
        %1073 = vmatpush1.msra.mxu0 %v841
        %1074 = vmatprep.subr.mxu0 0.0
        %1075 = vmatpush1.msra.mxu0 %v1061
        %1076 = vmatprep.subr.mxu0 0.0
        %1077 = vmatpush1.msra.mxu0 %v1062
        %1078 = vmatprep.subr.mxu0 0.0
        %1079 = vmatpush1.msra.mxu0 0.0
        %1080 = vmatprep.subr.mxu0 0.0
        %1081 = vmatpush1.msra.mxu0 0.0
        %1082 = vmatprep.subr.mxu0 0.0
        %1083 = vmatpush1.msra.mxu0 0.0
        %1084 = vmatprep.subr.mxu0 0.0
        %1085 = vmatpush1.msra.mxu0 0.0
        %1086 = vmatprep.subr.mxu0 0.0
        %1087 = vmatpush1.msra.mxu0 0.0
        %1088 = vmatprep.subr.mxu0 0.0
        %1089 = vmatpush1.msra.mxu0 0.0
        %1090 = vmatprep.subr.mxu0 0.0
        %1091 = vmatpush1.msra.mxu0 0.0
        %1092 = vmatprep.subr.mxu0 0.0
        %1093 = vmatpush1.msra.mxu0 0.0
        %1094 = vmatprep.subr.mxu0 0.0
        %1095 = vmatpush1.msra.mxu0 0.0
        %1096 = vmatprep.subr.mxu0 0.0
        %1097 = vmatpush1.msra.mxu0 0.0
        %1098 = vmatprep.subr.mxu0 0.0
        %1099 = vmatpush1.msra.mxu0 0.0
        %1100 = vmatprep.subr.mxu0 0.0
        %1101 = vmatpush1.msra.mxu0 0.0
        %1102 = vmatprep.subr.mxu0 0.0
        %1103 = vmatpush1.msra.mxu0 0.0
        %1104 = vmatprep.subr.mxu0 0.0
        %1105 = vmatpush1.msra.mxu0 0.0
        %1106 = vmatprep.subr.mxu0 0.0
        %1107 = vmatpush1.msra.mxu0 0.0
        %1108 = vmatprep.subr.mxu0 0.0
        %1109 = vmatpush1.msra.mxu0 0.0
        %1110 = vmatprep.subr.mxu0 0.0
        %1111 = vmatpush1.msra.mxu0 0.0
        %1112 = vmatprep.subr.mxu0 0.0
        %1113 = vmatpush1.msra.mxu0 0.0
        %1114 = vmatprep.subr.mxu0 0.0
        %1115 = vmatpush1.msra.mxu0 0.0
        %1116 = vmatprep.subr.mxu0 0.0
        %1117 = vmatpush1.msra.mxu0 0.0
        %1118 = vmatprep.subr.mxu0 0.0
        %1119 = vmatpush1.msra.mxu0 0.0
        %1120 = vmatprep.subr.mxu0 0.0
        %1121 = vmatpush1.msra.mxu0 0.0
        %1122 = vmatprep.subr.mxu0 0.0
        %1123 = vmatpush1.msra.mxu0 0.0
        %1124 = vmatprep.subr.mxu0 0.0
        %1125 = vmatpush1.msra.mxu0 0.0
        %1126 = vmatprep.subr.mxu0 0.0
        %1127 = vmatpush1.msra.mxu0 0.0
        %1128 = vmatprep.subr.mxu0 0.0
        %1129 = vmatpush1.msra.mxu0 0.0
        %1130 = vmatprep.subr.mxu0 0.0
        %1131 = vmatpush1.msra.mxu0 0.0
        %1132 = vmatprep.mubr.f32.mxu0 0.0
        %1133 = vmatmul.mubr.f32.gmra.mrb[0].mxu0 %v1066
        %v1134 = vpop.f32.mrb[0].mxu0
        %v1135 = vadd.f32 0.0, %v1134
        %v1136 = vpop.f32.mrb[0].mxu0
        %1137 = vdwg.mxu0
        %v1138 = vsel %vm1065, %v1040, 0
        %1140 = vmatprep.subr.mxu0 0.0
        %1141 = vmatpush1.msra.mxu0 %v835
        %1142 = vmatprep.subr.mxu0 0.0
        %1143 = vmatpush1.msra.mxu0 %v836
        %1144 = vmatprep.subr.mxu0 0.0
        %1145 = vmatpush1.msra.mxu0 %v837
        %1146 = vmatprep.subr.mxu0 0.0
        %1147 = vmatpush1.msra.mxu0 %v1053
        %1148 = vmatprep.subr.mxu0 0.0
        %1149 = vmatpush1.msra.mxu0 %v1054
        %1150 = vmatprep.subr.mxu0 0.0
        %1151 = vmatpush1.msra.mxu0 0.0
        %1152 = vmatprep.subr.mxu0 0.0
        %1153 = vmatpush1.msra.mxu0 0.0
        %1154 = vmatprep.subr.mxu0 0.0
        %1155 = vmatpush1.msra.mxu0 0.0
        %1156 = vmatprep.subr.mxu0 0.0
        %1157 = vmatpush1.msra.mxu0 0.0
        %1158 = vmatprep.subr.mxu0 0.0
        %1159 = vmatpush1.msra.mxu0 0.0
        %1160 = vmatprep.subr.mxu0 0.0
        %1161 = vmatpush1.msra.mxu0 0.0
        %1162 = vmatprep.subr.mxu0 0.0
        %1163 = vmatpush1.msra.mxu0 0.0
        %1164 = vmatprep.subr.mxu0 0.0
        %1165 = vmatpush1.msra.mxu0 0.0
        %1166 = vmatprep.subr.mxu0 0.0
        %1167 = vmatpush1.msra.mxu0 0.0
        %1168 = vmatprep.subr.mxu0 0.0
        %1169 = vmatpush1.msra.mxu0 0.0
        %1170 = vmatprep.subr.mxu0 0.0
        %1171 = vmatpush1.msra.mxu0 0.0
        %1172 = vmatprep.subr.mxu0 0.0
        %1173 = vmatpush1.msra.mxu0 0.0
        %1174 = vmatprep.subr.mxu0 0.0
        %1175 = vmatpush1.msra.mxu0 0.0
        %1176 = vmatprep.subr.mxu0 0.0
        %1177 = vmatpush1.msra.mxu0 0.0
        %1178 = vmatprep.subr.mxu0 0.0
        %1179 = vmatpush1.msra.mxu0 0.0
        %1180 = vmatprep.subr.mxu0 0.0
        %1181 = vmatpush1.msra.mxu0 0.0
        %1182 = vmatprep.subr.mxu0 0.0
        %1183 = vmatpush1.msra.mxu0 0.0
        %1184 = vmatprep.subr.mxu0 0.0
        %1185 = vmatpush1.msra.mxu0 0.0
        %1186 = vmatprep.subr.mxu0 0.0
        %1187 = vmatpush1.msra.mxu0 0.0
        %1188 = vmatprep.subr.mxu0 0.0
        %1189 = vmatpush1.msra.mxu0 0.0
        %1190 = vmatprep.subr.mxu0 0.0
        %1191 = vmatpush1.msra.mxu0 0.0
        %1192 = vmatprep.subr.mxu0 0.0
        %1193 = vmatpush1.msra.mxu0 0.0
        %1194 = vmatprep.subr.mxu0 0.0
        %1195 = vmatpush1.msra.mxu0 0.0
        %1196 = vmatprep.subr.mxu0 0.0
        %1197 = vmatpush1.msra.mxu0 0.0
        %1198 = vmatprep.subr.mxu0 0.0
        %1199 = vmatpush1.msra.mxu0 0.0
        %1200 = vmatprep.subr.mxu0 0.0
        %1201 = vmatpush1.msra.mxu0 0.0
        %1202 = vmatprep.subr.mxu0 0.0
        %1203 = vmatpush1.msra.mxu0 0.0
        %1204 = vmatprep.mubr.f32.mxu0 0.0
        %1205 = vmatmul.mubr.f32.gmra.mrb[0].mxu0 %v1138
        %v1206 = vpop.f32.mrb[0].mxu0
        %v1207 = vadd.f32 %v1135, %v1206
        %v1208 = vpop.f32.mrb[0].mxu0
        %1209 = vdwg.mxu0
        %vm1210 = vcmask 648192
        %1211 = vst.msk [vmem:[%s242] sm:$0x3] %vm1210, %v1207
        %s1212 = sand.u32 %s159, 1
        %s1213 = scalar_lea.sflag [#allocation3], %s1212
        %s1214 = sand.u32 %s159, 1
        %s1215 = smul.addr %s1214, 2
        %s1216 = scalar_lea.vmem [#allocation2], %s1215
        // Predicated region
        $region45: #{generator_forward.1} parent=43 // pred_check
          %p1217 = pneg %p169
        $region46: #{generator_forward.1} parent=43 // pred_check_branch
          %1219 = sbr.rel (%p1217) target = $region48
        $region47: #{generator_forward.1} parent=43 // pred_region
          %s1221 = ssub.s32 32, 32
          %1222 = vsyncadd %s1213, %s1221
          %s1223 = smul.addr %s20, 32
          %s1224 = scalar_lea.hbm %s6, %s1223
          %s1226 = sshll.u32 %s1216, 4
          %s1227 = int_to_ptr.vmem [resolvable:$true] %s1226
          %1229 = dma.vmem_to_hbm [thread:$0]  %s1227, 32, %s1224, %s1213
        $region48: #{generator_forward.1} parent=43 // pred_fallthru
          _
      $region44: #{generator_forward.1} parent=5 // pred_fallthru
        _
      %p1230 = scmp.le.s32.totalorder 2, %s15
      // Predicated region
      $region49: #{generator_forward.1} parent=5 // pred_check
        %p1231 = pneg %p1230
      $region50: #{generator_forward.1} parent=5 // pred_check_branch
        %1233 = sbr.rel (%p1231) target = $region52
      $region51: #{generator_forward.1} parent=5 // pred_region
        %s1234 = ssub.s32 %s15, 2
        // Predicated region
        $region53: #{generator_forward.1} parent=51 // pred_check
          %p1235 = pneg %p175
        $region54: #{generator_forward.1} parent=51 // pred_check_branch
          %1237 = sbr.rel (%p1235) target = $region56
        $region55: #{generator_forward.1} parent=51 // pred_region
          %s1238 = sand.u32 %s160, 1
          %s1239 = scalar_lea.sflag [#allocation3], %s1238
          %s1240 = sand.u32 %s160, 1
          %s1241 = smul.addr %s1240, 2
          %s1242 = scalar_lea.vmem [#allocation2], %s1241
          %1243 = dma.done %s1239, 32
        $region56: #{generator_forward.1} parent=51 // pred_fallthru
          _
      $region52: #{generator_forward.1} parent=5 // pred_fallthru
        _
    $region6: #{generator_forward.1} parent=1 // loop_footer
      %s19 = sadd.s32 1, %s15
    $region7: #{generator_forward.1} parent=1 // loop_footer_branch
      %14 = sbr.rel target = $region3
    $region8: #{generator_forward.1} parent=1 // loop_exit
      _
    %1244 = vsyncpa [#allocation3], 1
    %s1245 = scalar_lea.sflag [#allocation3], 1
    %1246 = vsyncpa %s1245, 1

</llo_original>
